<compile_context>
chip_gen: v7x
topology: tpu7x:2x2x1
jax: 0.10.0
libtpu: 0.0.40
codegen_flags: <defaults>
</compile_context>

<pallas_src>
import jax
import jax.numpy as jnp
from jax.experimental import pallas as pl
from jax.experimental.pallas import tpu as pltpu

INPUT_DIM = 9
HSIZE = 64
OUTPUT_DIM = 4

# Default batch tile (lanes).  Large enough that per-step HBM payload
# (~0.8 MiB) dwarfs the ~0.35 us per-grid-step overhead, small enough to fit
# every generation's scoped-VMEM default (see header math).
DEFAULT_TM = 16384
LANE = 128


def _round_up(n, m):
    return ((n + m - 1) // m) * m


def policy_net_kernel(xt_ref, w1_ref, b1_ref, w2_ref, b2_ref, o_ref):
    # xt_ref: (9, TM)   w1: (64, 9)   b1: (64, 1)   w2: (4, 64)   b2: (4, 1)
    xt = xt_ref[...]
    # fc1 + ReLU : (64, 9) @ (9, TM) -> (64, TM)
    h = jnp.dot(w1_ref[...], xt, preferred_element_type=jnp.float32)
    h = jnp.maximum(h + b1_ref[...], 0.0)
    # fc2 : (4, 64) @ (64, TM) -> (4, TM)
    logits = jnp.dot(w2_ref[...], h, preferred_element_type=jnp.float32)
    logits = logits + b2_ref[...]
    # Numerically-stable softmax over the class axis (sublane axis, size 4).
    # Exact divide: rows must sum to 1 (this output can feed sampling /
    # log-prob downstream, as in PolicyNet.act).
    m = jnp.max(logits, axis=0, keepdims=True)          # (1, TM)
    e = jnp.exp(logits - m)                              # (4, TM)
    denom = jnp.sum(e, axis=0, keepdims=True)            # (1, TM)
    o_ref[...] = (e / denom).astype(o_ref.dtype)


def policy_net_forward(x, w1, b1, w2, b2, *, tm=DEFAULT_TM):
    """x: (B, 9) f32.  w1: (64, 9), b1: (64, 1), w2: (4, 64), b2: (4, 1)
    (PyTorch nn.Linear (out_features, in_features) layout; biases as columns).
    Returns softmax probabilities of shape (B, 4)."""
    B = x.shape[0]

    # Lane-axis tile: multiple of 128, capped at ~ceil(B/2) so that B > 128
    # yields >= 2 grid steps (v7x megacore sharding); never below one lane
    # group.  Caller-supplied tm is rounded, never trusted, to avoid
    # BlockSpec divisibility failures.
    cap = _round_up(pl.cdiv(max(B, 1), 2), LANE)
    tm_eff = max(LANE, _round_up(min(tm, cap), LANE))
    b_pad = _round_up(max(B, 1), tm_eff)

    # Kernel operates in (feature, batch) orientation: batch on the lane axis.
    xt = x.T                                              # (9, B)
    if b_pad != B:
        # Zero-padded columns produce harmless softmax columns, sliced off below.
        xt = jnp.pad(xt, ((0, 0), (0, b_pad - B)))

    grid = (b_pad // tm_eff,)

    cost = pl.CostEstimate(
        flops=2 * b_pad * (INPUT_DIM * HSIZE + HSIZE * OUTPUT_DIM),
        transcendentals=b_pad * OUTPUT_DIM,               # exp per logit
        bytes_accessed=b_pad * (INPUT_DIM + OUTPUT_DIM) * 4
        + 4 * (INPUT_DIM * HSIZE + HSIZE + HSIZE * OUTPUT_DIM + OUTPUT_DIM),
    )

    out_t = pl.pallas_call(
        policy_net_kernel,
        out_shape=jax.ShapeDtypeStruct((OUTPUT_DIM, b_pad), jnp.float32),
        grid=grid,
        in_specs=[
            # x^T: streamed per lane-dense batch tile (auto double-buffered).
            pl.BlockSpec((INPUT_DIM, tm_eff), lambda i: (0, i)),
            # Weights/biases: constant block index -> DMA'd once, stay resident.
            pl.BlockSpec((HSIZE, INPUT_DIM), lambda i: (0, 0)),
            pl.BlockSpec((HSIZE, 1), lambda i: (0, 0)),
            pl.BlockSpec((OUTPUT_DIM, HSIZE), lambda i: (0, 0)),
            pl.BlockSpec((OUTPUT_DIM, 1), lambda i: (0, 0)),
        ],
        out_specs=pl.BlockSpec((OUTPUT_DIM, tm_eff), lambda i: (0, i)),
        compiler_params=pltpu.CompilerParams(
            dimension_semantics=("parallel",),        # v7x: shard batch grid over 2 TCs
            vmem_limit_bytes=32 * 1024 * 1024,        # headroom on all generations
        ),
        cost_estimate=cost,
    )(xt, w1, b1, w2, b2)

    return out_t[:, :B].T                                 # (B, 4)


def init_params(key):
    """Deterministic init mimicking torch.nn.Linear default (U[-1/sqrt(fan_in), +]).
    Weights kept in PyTorch (out_features, in_features) layout; biases as columns."""
    k1, k2, k3, k4 = jax.random.split(key, 4)
    bound1 = 1.0 / jnp.sqrt(INPUT_DIM)
    bound2 = 1.0 / jnp.sqrt(HSIZE)
    w1 = jax.random.uniform(k1, (HSIZE, INPUT_DIM), jnp.float32, -bound1, bound1)
    b1 = jax.random.uniform(k2, (HSIZE, 1), jnp.float32, -bound1, bound1)
    w2 = jax.random.uniform(k3, (OUTPUT_DIM, HSIZE), jnp.float32, -bound2, bound2)
    b2 = jax.random.uniform(k4, (OUTPUT_DIM, 1), jnp.float32, -bound2, bound2)
    return w1, b1, w2, b2


def reference_forward(x, w1, b1, w2, b2):
    hp = jax.lax.Precision.HIGHEST
    h = jnp.maximum(jnp.dot(x, w1.T, precision=hp) + b1[:, 0], 0.0)
    logits = jnp.dot(h, w2.T, precision=hp) + b2[:, 0]
    return jax.nn.softmax(logits, axis=-1)


if __name__ == "__main__":
    key = jax.random.PRNGKey(0)
    kx, kx2, kp = jax.random.split(key, 3)
    w1, b1, w2, b2 = init_params(kp)

    # Small batch: single grid step (one 128-lane tile, batch padded 8 -> 128).
    B = 8
    x = jax.random.normal(kx, (B, INPUT_DIM), jnp.float32)
    out = jax.block_until_ready(policy_net_forward(x, w1, b1, w2, b2))
    ref = reference_forward(x, w1, b1, w2, b2)
    assert out.shape == (B, OUTPUT_DIM)
    # Exact softmax divide -> rows sum to 1 within f32 rounding.
    assert jnp.allclose(jnp.sum(out, axis=-1), 1.0, atol=1e-5)
    assert jnp.allclose(out, ref, atol=2e-3, rtol=2e-3)

    # Non-multiple batch with a small caller tm: exercises tile rounding,
    # padding, a multi-step grid, and weights staying resident across steps.
    B2 = 300
    x2 = jax.random.normal(kx2, (B2, INPUT_DIM), jnp.float32)
    out2 = jax.block_until_ready(policy_net_forward(x2, w1, b1, w2, b2, tm=100))
    ref2 = reference_forward(x2, w1, b1, w2, b2)
    assert out2.shape == (B2, OUTPUT_DIM)
    assert jnp.allclose(jnp.sum(out2, axis=-1), 1.0, atol=1e-5)
    assert jnp.allclose(out2, ref2, atol=2e-3, rtol=2e-3)

    print("KERNEL_OK")
</pallas_src>

<mosaic_0001>
module attributes {stable_mosaic.version = 11 : i64} {
  func.func @policy_net_kernel(%arg0: i32, %arg1: memref<9x128xf32, #tpu.memory_space<vmem>>, %arg2: memref<64x9xf32, #tpu.memory_space<vmem>>, %arg3: memref<64x1xf32, #tpu.memory_space<vmem>>, %arg4: memref<4x64xf32, #tpu.memory_space<vmem>>, %arg5: memref<4x1xf32, #tpu.memory_space<vmem>>, %arg6: memref<4x128xf32, #tpu.memory_space<vmem>>) attributes {dimension_semantics = [#tpu.dimension_semantics<parallel>], iteration_bounds = array<i64: 1>, scalar_prefetch = 0 : i64, scratch_operands = 0 : i64, tpu.core_type = #tpu.core_type<tc>, window_params = [{transform_indices = @transform_0, window_bounds = array<i64: 9, 128>}, {pipeline_mode = #tpu.pipeline_mode<synchronous>, transform_indices = @transform_1, window_bounds = array<i64: 64, 9>}, {pipeline_mode = #tpu.pipeline_mode<synchronous>, transform_indices = @transform_2, window_bounds = array<i64: 64, 1>}, {pipeline_mode = #tpu.pipeline_mode<synchronous>, transform_indices = @transform_3, window_bounds = array<i64: 4, 64>}, {pipeline_mode = #tpu.pipeline_mode<synchronous>, transform_indices = @transform_4, window_bounds = array<i64: 4, 1>}, {transform_indices = @transform_5, window_bounds = array<i64: 4, 128>}]} {
    %c0 = arith.constant 0 : index
    %c0_0 = arith.constant 0 : index
    %0 = vector.load %arg1[%c0, %c0_0] : memref<9x128xf32, #tpu.memory_space<vmem>>, vector<9x128xf32>
    %c0_1 = arith.constant 0 : index
    %c0_2 = arith.constant 0 : index
    %1 = vector.load %arg2[%c0_1, %c0_2] : memref<64x9xf32, #tpu.memory_space<vmem>>, vector<64x9xf32>
    %cst = arith.constant dense<0.000000e+00> : vector<64x128xf32>
    %2 = tpu.matmul %1, %0, %cst {dimension_numbers = #tpu.dot_dimension_numbers<[1], [0], [0], [1], [0, 0, 1, 1], [], []>} : vector<64x9xf32>, vector<9x128xf32>, vector<64x128xf32> -> vector<64x128xf32>
    %c0_3 = arith.constant 0 : index
    %c0_4 = arith.constant 0 : index
    %3 = vector.load %arg3[%c0_3, %c0_4] : memref<64x1xf32, #tpu.memory_space<vmem>>, vector<64x1xf32>
    %4 = vector.broadcast %3 : vector<64x1xf32> to vector<64x128xf32>
    %5 = arith.addf %2, %4 : vector<64x128xf32>
    %cst_5 = arith.constant 0.000000e+00 : f32
    %6 = vector.broadcast %cst_5 : f32 to vector<64x128xf32>
    %7 = arith.maximumf %5, %6 : vector<64x128xf32>
    %c0_6 = arith.constant 0 : index
    %c0_7 = arith.constant 0 : index
    %8 = vector.load %arg4[%c0_6, %c0_7] : memref<4x64xf32, #tpu.memory_space<vmem>>, vector<4x64xf32>
    %cst_8 = arith.constant dense<0.000000e+00> : vector<4x128xf32>
    %9 = tpu.matmul %8, %7, %cst_8 {dimension_numbers = #tpu.dot_dimension_numbers<[1], [0], [0], [1], [0, 0, 1, 1], [], []>} : vector<4x64xf32>, vector<64x128xf32>, vector<4x128xf32> -> vector<4x128xf32>
    %c0_9 = arith.constant 0 : index
    %c0_10 = arith.constant 0 : index
    %10 = vector.load %arg5[%c0_9, %c0_10] : memref<4x1xf32, #tpu.memory_space<vmem>>, vector<4x1xf32>
    %11 = vector.broadcast %10 : vector<4x1xf32> to vector<4x128xf32>
    %12 = arith.addf %9, %11 : vector<4x128xf32>
    %cst_11 = arith.constant dense<0xFF800000> : vector<128xf32>
    %13 = vector.multi_reduction <maximumf>, %12, %cst_11 [0] : vector<4x128xf32> to vector<128xf32>
    %14 = vector.shape_cast %13 : vector<128xf32> to vector<1x128xf32>
    %15 = vector.broadcast %14 : vector<1x128xf32> to vector<4x128xf32>
    %16 = arith.subf %12, %15 : vector<4x128xf32>
    %17 = math.exp %16 : vector<4x128xf32>
    %cst_12 = arith.constant dense<0.000000e+00> : vector<128xf32>
    %18 = vector.multi_reduction <add>, %17, %cst_12 [0] : vector<4x128xf32> to vector<128xf32>
    %19 = vector.shape_cast %18 : vector<128xf32> to vector<1x128xf32>
    %20 = vector.broadcast %19 : vector<1x128xf32> to vector<4x128xf32>
    %21 = arith.divf %17, %20 : vector<4x128xf32>
    %c0_13 = arith.constant 0 : index
    %c0_14 = arith.constant 0 : index
    %22 = vector.load %arg6[%c0_13, %c0_14] : memref<4x128xf32, #tpu.memory_space<vmem>>, vector<4x128xf32>
    tpu.vector_store %arg6[%c0_13, %c0_14], %21 {strides = array<i32>} : memref<4x128xf32, #tpu.memory_space<vmem>>, vector<4x128xf32>,
    return
  }
  func.func @transform_0(%arg0: i32) -> (i32, i32) {
    %c0_i32 = arith.constant 0 : i32
    %c0_i32_0 = arith.constant 0 : i32
    return %c0_i32, %arg0 : i32, i32
  }
  func.func @transform_1(%arg0: i32) -> (i32, i32) {
    %c0_i32 = arith.constant 0 : i32
    %c0_i32_0 = arith.constant 0 : i32
    %c0_i32_1 = arith.constant 0 : i32
    return %c0_i32, %c0_i32_0 : i32, i32
  }
  func.func @transform_2(%arg0: i32) -> (i32, i32) {
    %c0_i32 = arith.constant 0 : i32
    %c0_i32_0 = arith.constant 0 : i32
    %c0_i32_1 = arith.constant 0 : i32
    return %c0_i32, %c0_i32_0 : i32, i32
  }
  func.func @transform_3(%arg0: i32) -> (i32, i32) {
    %c0_i32 = arith.constant 0 : i32
    %c0_i32_0 = arith.constant 0 : i32
    %c0_i32_1 = arith.constant 0 : i32
    return %c0_i32, %c0_i32_0 : i32, i32
  }
  func.func @transform_4(%arg0: i32) -> (i32, i32) {
    %c0_i32 = arith.constant 0 : i32
    %c0_i32_0 = arith.constant 0 : i32
    %c0_i32_1 = arith.constant 0 : i32
    return %c0_i32, %c0_i32_0 : i32, i32
  }
  func.func @transform_5(%arg0: i32) -> (i32, i32) {
    %c0_i32 = arith.constant 0 : i32
    %c0_i32_0 = arith.constant 0 : i32
    return %c0_i32, %arg0 : i32, i32
  }
}

</mosaic_0001>

<llo_original>
// kernel: tpu_custom_call.1
$region0: #{tpu_custom_call.1}
  #allocation0 [shape = 'u32[]', space=smem, size = 0x4, offset = 0x4, fixed_abs, tag = 'smem constant byte address 0x4 - core index']
  #allocation1 [shape = 'u32[144,128]{1,0:T(1,128)}', space=vmem, size = 0x12000, scoped, tag = 'internal scratch']
  %s0 = inlined_call_operand.vmem [shape: f32[9,128], index: 0, kind: input, shape index: {}]
  %s1 = inlined_call_operand.vmem [shape: f32[64,9], index: 1, kind: input, shape index: {}]
  %s2 = inlined_call_operand.vmem [shape: f32[64,1], index: 2, kind: input, shape index: {}]
  %s3 = inlined_call_operand.vmem [shape: f32[4,64], index: 3, kind: input, shape index: {}]
  %s4 = inlined_call_operand.vmem [shape: f32[4,1], index: 4, kind: input, shape index: {}]
  %s5 = inlined_call_operand.hbm [shape: f32[4,128], index: 5, kind: output, shape index: {}]
  %s6 = sld [smem:[#allocation0]]
  $region30: #{tpu_custom_call.1} parent=0
    _
  %s8 = ssub.s32 1, %s6
  %s9 = scalar_select 0, %s8, %s6
  $region1: #{tpu_custom_call.1} parent=0
    #allocation2 [shape = 'u8[2048]{0}', space=vmem, size = 0x800, scoped, tag = 'output window, operand 0, single buffered']
    #allocation3 [shape = 's32[1]{0}', space=sflag, size = 0x4, scoped, tag = 'scoped memory for tpu_custom_call.1']
    %10 = vsyncpa [#allocation3], 0
    // Predicated region
    $region2: #{tpu_custom_call.1} parent=1 // pred_check
      _
    $region3: #{tpu_custom_call.1} parent=1 // pred_check_branch
      %12 = sbr.rel (0) target = $region5
    $region4: #{tpu_custom_call.1} parent=1 // pred_region
      _
    $region5: #{tpu_custom_call.1} parent=1 // pred_fallthru
      _
    // Predicated region
    $region6: #{tpu_custom_call.1} parent=1 // pred_check
      _
    $region7: #{tpu_custom_call.1} parent=1 // pred_check_branch
      %14 = sbr.rel (0) target = $region9
    $region8: #{tpu_custom_call.1} parent=1 // pred_region
      _
    $region9: #{tpu_custom_call.1} parent=1 // pred_fallthru
      _
    // Predicated region
    $region10: #{tpu_custom_call.1} parent=1 // pred_check
      _
    $region11: #{tpu_custom_call.1} parent=1 // pred_check_branch
      %16 = sbr.rel (0) target = $region13
    $region12: #{tpu_custom_call.1} parent=1 // pred_region
      _
    $region13: #{tpu_custom_call.1} parent=1 // pred_fallthru
      _
    // Predicated region
    $region14: #{tpu_custom_call.1} parent=1 // pred_check
      _
    $region15: #{tpu_custom_call.1} parent=1 // pred_check_branch
      %18 = sbr.rel (0) target = $region17
    $region16: #{tpu_custom_call.1} parent=1 // pred_region
      _
    $region17: #{tpu_custom_call.1} parent=1 // pred_fallthru
      _
    // Predicated region
    $region18: #{tpu_custom_call.1} parent=1 // pred_check
      _
    $region19: #{tpu_custom_call.1} parent=1 // pred_check_branch
      %20 = sbr.rel (0) target = $region21
    $region20: #{tpu_custom_call.1} parent=1 // pred_region
      _
    $region21: #{tpu_custom_call.1} parent=1 // pred_fallthru
      _
    %v21 = vld [vmem:[%s0] sm:$0xff]
    %v22 = vld [vmem:[%s0 + $0x8] sm:$0x1]
    %v23 = vld [vmem:[%s1] sm:$0xff]
    %v24 = vld [vmem:[%s1 + $0x8] sm:$0xff]
    %v25 = vld [vmem:[%s1 + $0x10] sm:$0xff]
    %v26 = vld [vmem:[%s1 + $0x18] sm:$0xff]
    %v27 = vld [vmem:[%s1 + $0x20] sm:$0xff]
    %v28 = vld [vmem:[%s1 + $0x28] sm:$0xff]
    %v29 = vld [vmem:[%s1 + $0x30] sm:$0xff]
    %v30 = vld [vmem:[%s1 + $0x38] sm:$0xff]
    %v31 = vld [vmem:[%s2] sm:$0xff]
    %v32 = vld [vmem:[%s2 + $0x8] sm:$0xff]
    %v33 = vld [vmem:[%s2 + $0x10] sm:$0xff]
    %v34 = vld [vmem:[%s2 + $0x18] sm:$0xff]
    %v35 = vld [vmem:[%s2 + $0x20] sm:$0xff]
    %v36 = vld [vmem:[%s2 + $0x28] sm:$0xff]
    %v37 = vld [vmem:[%s2 + $0x30] sm:$0xff]
    %v38 = vld [vmem:[%s2 + $0x38] sm:$0xff]
    %40 = vset.pattern.permute.xlu0 0
    %41 = vperm.xlu0 %40, %v31
    %v42 = vpop.permute.xlu0 %41
    %45 = vset.pattern.permute.xlu0 0
    %46 = vperm.xlu0 %45, %v32
    %v47 = vpop.permute.xlu0 %46
    %50 = vset.pattern.permute.xlu0 0
    %51 = vperm.xlu0 %50, %v33
    %v52 = vpop.permute.xlu0 %51
    %55 = vset.pattern.permute.xlu0 0
    %56 = vperm.xlu0 %55, %v34
    %v57 = vpop.permute.xlu0 %56
    %60 = vset.pattern.permute.xlu0 0
    %61 = vperm.xlu0 %60, %v35
    %v62 = vpop.permute.xlu0 %61
    %65 = vset.pattern.permute.xlu0 0
    %66 = vperm.xlu0 %65, %v36
    %v67 = vpop.permute.xlu0 %66
    %70 = vset.pattern.permute.xlu0 0
    %71 = vperm.xlu0 %70, %v37
    %v72 = vpop.permute.xlu0 %71
    %75 = vset.pattern.permute.xlu0 0
    %76 = vperm.xlu0 %75, %v38
    %v77 = vpop.permute.xlu0 %76
    %vm79 = vcmask 72704
    %v81 = vsel %vm79, %v23, 0
    %v84 = vsel %vm79, %v24, 0
    %v87 = vsel %vm79, %v25, 0
    %v90 = vsel %vm79, %v26, 0
    %v93 = vsel %vm79, %v27, 0
    %v96 = vsel %vm79, %v28, 0
    %v99 = vsel %vm79, %v29, 0
    %v102 = vsel %vm79, %v30, 0
    %vm104 = vcmask 1040384
    %v106 = vsel %vm104, %v22, 0
    %108 = vmatprep.subr.mxu0 0.0
    %109 = vmatpush1.msra.mxu0 %v21
    %110 = vmatprep.subr.mxu0 0.0
    %111 = vmatpush1.msra.mxu0 %v106
    %112 = vmatprep.subr.mxu0 0.0
    %113 = vmatpush1.msra.mxu0 0.0
    %114 = vmatprep.subr.mxu0 0.0
    %115 = vmatpush1.msra.mxu0 0.0
    %116 = vmatprep.subr.mxu0 0.0
    %117 = vmatpush1.msra.mxu0 0.0
    %118 = vmatprep.subr.mxu0 0.0
    %119 = vmatpush1.msra.mxu0 0.0
    %120 = vmatprep.subr.mxu0 0.0
    %121 = vmatpush1.msra.mxu0 0.0
    %122 = vmatprep.subr.mxu0 0.0
    %123 = vmatpush1.msra.mxu0 0.0
    %124 = vmatprep.subr.mxu0 0.0
    %125 = vmatpush1.msra.mxu0 0.0
    %126 = vmatprep.subr.mxu0 0.0
    %127 = vmatpush1.msra.mxu0 0.0
    %128 = vmatprep.subr.mxu0 0.0
    %129 = vmatpush1.msra.mxu0 0.0
    %130 = vmatprep.subr.mxu0 0.0
    %131 = vmatpush1.msra.mxu0 0.0
    %132 = vmatprep.subr.mxu0 0.0
    %133 = vmatpush1.msra.mxu0 0.0
    %134 = vmatprep.subr.mxu0 0.0
    %135 = vmatpush1.msra.mxu0 0.0
    %136 = vmatprep.subr.mxu0 0.0
    %137 = vmatpush1.msra.mxu0 0.0
    %138 = vmatprep.subr.mxu0 0.0
    %139 = vmatpush1.msra.mxu0 0.0
    %140 = vmatprep.subr.mxu0 0.0
    %141 = vmatpush1.msra.mxu0 0.0
    %142 = vmatprep.subr.mxu0 0.0
    %143 = vmatpush1.msra.mxu0 0.0
    %144 = vmatprep.subr.mxu0 0.0
    %145 = vmatpush1.msra.mxu0 0.0
    %146 = vmatprep.subr.mxu0 0.0
    %147 = vmatpush1.msra.mxu0 0.0
    %148 = vmatprep.subr.mxu0 0.0
    %149 = vmatpush1.msra.mxu0 0.0
    %150 = vmatprep.subr.mxu0 0.0
    %151 = vmatpush1.msra.mxu0 0.0
    %152 = vmatprep.subr.mxu0 0.0
    %153 = vmatpush1.msra.mxu0 0.0
    %154 = vmatprep.subr.mxu0 0.0
    %155 = vmatpush1.msra.mxu0 0.0
    %156 = vmatprep.subr.mxu0 0.0
    %157 = vmatpush1.msra.mxu0 0.0
    %158 = vmatprep.subr.mxu0 0.0
    %159 = vmatpush1.msra.mxu0 0.0
    %160 = vmatprep.subr.mxu0 0.0
    %161 = vmatpush1.msra.mxu0 0.0
    %162 = vmatprep.subr.mxu0 0.0
    %163 = vmatpush1.msra.mxu0 0.0
    %164 = vmatprep.subr.mxu0 0.0
    %165 = vmatpush1.msra.mxu0 0.0
    %166 = vmatprep.subr.mxu0 0.0
    %167 = vmatpush1.msra.mxu0 0.0
    %168 = vmatprep.subr.mxu0 0.0
    %169 = vmatpush1.msra.mxu0 0.0
    %170 = vmatprep.subr.mxu0 0.0
    %171 = vmatpush1.msra.mxu0 0.0
    %172 = vmatprep.mubr.f32.mxu0 0.0
    %173 = vmatmul.mubr.f32.gmra.mrb[0].mxu0 %v81
    %v174 = vpop.f32.mrb[0].mxu0
    %v175 = vadd.f32 %v42, %v174
    %v176 = vpop.f32.mrb[0].mxu0
    %177 = vmatprep.mubr.f32.mxu0 0.0
    %178 = vmatmul.mubr.f32.gmra.mrb[0].mxu0 %v84
    %v179 = vpop.f32.mrb[0].mxu0
    %v180 = vadd.f32 %v47, %v179
    %v181 = vpop.f32.mrb[0].mxu0
    %182 = vmatprep.mubr.f32.mxu0 0.0
    %183 = vmatmul.mubr.f32.gmra.mrb[0].mxu0 %v87
    %v184 = vpop.f32.mrb[0].mxu0
    %v185 = vadd.f32 %v52, %v184
    %v186 = vpop.f32.mrb[0].mxu0
    %187 = vmatprep.mubr.f32.mxu0 0.0
    %188 = vmatmul.mubr.f32.gmra.mrb[0].mxu0 %v90
    %v189 = vpop.f32.mrb[0].mxu0
    %v190 = vadd.f32 %v57, %v189
    %v191 = vpop.f32.mrb[0].mxu0
    %192 = vmatprep.mubr.f32.mxu0 0.0
    %193 = vmatmul.mubr.f32.gmra.mrb[0].mxu0 %v93
    %v194 = vpop.f32.mrb[0].mxu0
    %v195 = vadd.f32 %v62, %v194
    %v196 = vpop.f32.mrb[0].mxu0
    %197 = vmatprep.mubr.f32.mxu0 0.0
    %198 = vmatmul.mubr.f32.gmra.mrb[0].mxu0 %v96
    %v199 = vpop.f32.mrb[0].mxu0
    %v200 = vadd.f32 %v67, %v199
    %v201 = vpop.f32.mrb[0].mxu0
    %202 = vmatprep.mubr.f32.mxu0 0.0
    %203 = vmatmul.mubr.f32.gmra.mrb[0].mxu0 %v99
    %v204 = vpop.f32.mrb[0].mxu0
    %v205 = vadd.f32 %v72, %v204
    %v206 = vpop.f32.mrb[0].mxu0
    %207 = vmatprep.mubr.f32.mxu0 0.0
    %208 = vmatmul.mubr.f32.gmra.mrb[0].mxu0 %v102
    %v209 = vpop.f32.mrb[0].mxu0
    %v210 = vadd.f32 %v77, %v209
    %v211 = vpop.f32.mrb[0].mxu0
    %212 = vdwg.mxu0
    %v213 = vmax.f32 %v175, 0.0
    %v214 = vmax.f32 %v180, 0.0
    %v215 = vmax.f32 %v185, 0.0
    %v216 = vmax.f32 %v190, 0.0
    %v217 = vmax.f32 %v195, 0.0
    %v218 = vmax.f32 %v200, 0.0
    %v219 = vmax.f32 %v205, 0.0
    %v220 = vmax.f32 %v210, 0.0
    %v221 = vld [vmem:[%s3] sm:$0xf]
    %v222 = vld [vmem:[%s4] sm:$0xf]
    %224 = vset.pattern.permute.xlu0 0
    %225 = vperm.xlu0 %224, %v222
    %v226 = vpop.permute.xlu0 %225
    %vm228 = vcmask 523264
    %v230 = vsel %vm228, %v221, 0
    %232 = vmatprep.subr.mxu0 0.0
    %233 = vmatpush1.msra.mxu0 %v213
    %234 = vmatprep.subr.mxu0 0.0
    %235 = vmatpush1.msra.mxu0 %v214
    %236 = vmatprep.subr.mxu0 0.0
    %237 = vmatpush1.msra.mxu0 %v215
    %238 = vmatprep.subr.mxu0 0.0
    %239 = vmatpush1.msra.mxu0 %v216
    %240 = vmatprep.subr.mxu0 0.0
    %241 = vmatpush1.msra.mxu0 %v217
    %242 = vmatprep.subr.mxu0 0.0
    %243 = vmatpush1.msra.mxu0 %v218
    %244 = vmatprep.subr.mxu0 0.0
    %245 = vmatpush1.msra.mxu0 %v219
    %246 = vmatprep.subr.mxu0 0.0
    %247 = vmatpush1.msra.mxu0 %v220
    %248 = vmatprep.subr.mxu0 0.0
    %249 = vmatpush1.msra.mxu0 0.0
    %250 = vmatprep.subr.mxu0 0.0
    %251 = vmatpush1.msra.mxu0 0.0
    %252 = vmatprep.subr.mxu0 0.0
    %253 = vmatpush1.msra.mxu0 0.0
    %254 = vmatprep.subr.mxu0 0.0
    %255 = vmatpush1.msra.mxu0 0.0
    %256 = vmatprep.subr.mxu0 0.0
    %257 = vmatpush1.msra.mxu0 0.0
    %258 = vmatprep.subr.mxu0 0.0
    %259 = vmatpush1.msra.mxu0 0.0
    %260 = vmatprep.subr.mxu0 0.0
    %261 = vmatpush1.msra.mxu0 0.0
    %262 = vmatprep.subr.mxu0 0.0
    %263 = vmatpush1.msra.mxu0 0.0
    %264 = vmatprep.subr.mxu0 0.0
    %265 = vmatpush1.msra.mxu0 0.0
    %266 = vmatprep.subr.mxu0 0.0
    %267 = vmatpush1.msra.mxu0 0.0
    %268 = vmatprep.subr.mxu0 0.0
    %269 = vmatpush1.msra.mxu0 0.0
    %270 = vmatprep.subr.mxu0 0.0
    %271 = vmatpush1.msra.mxu0 0.0
    %272 = vmatprep.subr.mxu0 0.0
    %273 = vmatpush1.msra.mxu0 0.0
    %274 = vmatprep.subr.mxu0 0.0
    %275 = vmatpush1.msra.mxu0 0.0
    %276 = vmatprep.subr.mxu0 0.0
    %277 = vmatpush1.msra.mxu0 0.0
    %278 = vmatprep.subr.mxu0 0.0
    %279 = vmatpush1.msra.mxu0 0.0
    %280 = vmatprep.subr.mxu0 0.0
    %281 = vmatpush1.msra.mxu0 0.0
    %282 = vmatprep.subr.mxu0 0.0
    %283 = vmatpush1.msra.mxu0 0.0
    %284 = vmatprep.subr.mxu0 0.0
    %285 = vmatpush1.msra.mxu0 0.0
    %286 = vmatprep.subr.mxu0 0.0
    %287 = vmatpush1.msra.mxu0 0.0
    %288 = vmatprep.subr.mxu0 0.0
    %289 = vmatpush1.msra.mxu0 0.0
    %290 = vmatprep.subr.mxu0 0.0
    %291 = vmatpush1.msra.mxu0 0.0
    %292 = vmatprep.subr.mxu0 0.0
    %293 = vmatpush1.msra.mxu0 0.0
    %294 = vmatprep.subr.mxu0 0.0
    %295 = vmatpush1.msra.mxu0 0.0
    %296 = vmatprep.mubr.f32.mxu0 0.0
    %297 = vmatmul.mubr.f32.gmra.mrb[0].mxu0 %v230
    %v298 = vpop.f32.mrb[0].mxu0
    %v299 = vadd.f32 %v226, %v298
    %v300 = vpop.f32.mrb[0].mxu0
    %301 = vdwg.mxu0
    %vm302 = vcmask 1043456
    %v303 = vsel %vm302, %v299, -inf
    %v304 = vrot.slane %v303, 4
    %v305 = vmax.f32 %v303, %v304
    %v306 = vrot.slane %v305, 2
    %v307 = vmax.f32 %v305, %v306
    %v308 = vrot.slane %v307, 1
    %v309 = vmax.f32 %v307, %v308
    %v310 = vsub.f32 %v299, %v309
    %v311 = vmul.f32 %v310, 1.442695
    %v312 = vpow.pop %v311
    %v313 = vsel %vm302, %v312, 0.0
    %v314 = vrot.slane %v313, 4
    %v315 = vadd.f32 %v313, %v314
    %v316 = vrot.slane %v315, 2
    %v317 = vadd.f32 %v315, %v316
    %v318 = vrot.slane %v317, 1
    %v319 = vadd.f32 %v317, %v318
    %v320 = vrcp.pop %v319
    %v321 = vmul.f32 %v312, %v320
    %322 = vst [vmem:[#allocation2] sm:$0xf] %v321
    // Predicated region
    $region22: #{tpu_custom_call.1} parent=1 // pred_check
      _
    $region23: #{tpu_custom_call.1} parent=1 // pred_check_branch
      %324 = sbr.rel (0) target = $region25
    $region24: #{tpu_custom_call.1} parent=1 // pred_region
      %s326 = ssub.s32 64, 64
      %327 = vsyncadd [#allocation3], %s326
      %s329 = sshll.u32 [#allocation2], 4
      %s330 = int_to_ptr.vmem [resolvable:$true] %s329
      %332 = dma.vmem_to_hbm [thread:$0]  %s330, 64, %s5, [#allocation3]
    $region25: #{tpu_custom_call.1} parent=1 // pred_fallthru
      _
    // Predicated region
    $region26: #{tpu_custom_call.1} parent=1 // pred_check
      _
    $region27: #{tpu_custom_call.1} parent=1 // pred_check_branch
      %334 = sbr.rel (0) target = $region29
    $region28: #{tpu_custom_call.1} parent=1 // pred_region
      %335 = dma.done [#allocation3], 64
    $region29: #{tpu_custom_call.1} parent=1 // pred_fallthru
      _
    %336 = vsyncpa [#allocation3], 1

</llo_original>
